<compile_context>
chip_gen: v7x
topology: tpu7x:2x2x1
jax: 0.10.0
libtpu: 0.0.40
codegen_flags: <defaults>
</compile_context>

<pallas_src>
import functools

import jax
import jax.numpy as jnp
from jax import lax
from jax.experimental import pallas as pl
from jax.experimental.pallas import tpu as pltpu


def _compute_loss_tile(k_ref, pred_ref, tz_ref, *, eps, tile_h):
    """Shared per-tile compute. Returns (loss_pix, valid_mask), each (tile_h, W)."""
    b = pl.program_id(0)
    h = pl.program_id(1)

    pred_X = pred_ref[0]            # (tH, W)
    pred_Y = pred_ref[1]
    pred_Z = pred_ref[2]
    target_Z = tz_ref[...]          # (tH, W)  -- only the Z channel was DMA'd

    tH, W = pred_X.shape

    # Intrinsics for this batch element (SMEM scalars): [cx, cy, 1/fx, 1/fy].
    cx = k_ref[b, 0]
    cy = k_ref[b, 1]
    inv_fx = k_ref[b, 2]
    inv_fy = k_ref[b, 3]

    valid_mask = (target_Z > eps).astype(jnp.float32)

    cols = lax.broadcasted_iota(jnp.int32, (tH, W), 1).astype(jnp.float32)
    rows = (lax.broadcasted_iota(jnp.int32, (tH, W), 0)
            + h * tile_h).astype(jnp.float32)            # global row index

    # scalar-reciprocal multiplies instead of full-plane divides
    x = (cols - cx) * pred_Z * inv_fx
    y = (rows - cy) * pred_Z * inv_fy

    loss_pix = (jnp.abs(pred_X - x) + jnp.abs(pred_Y - y)) * valid_mask
    return loss_pix, valid_mask


def _sum_kernel(k_ref, pred_ref, tz_ref, loss_sum_ref, mask_sum_ref,
                *, eps, tile_h):
    """mean/sum path: per-batch partial sums only, no loss-map write."""
    h = pl.program_id(1)

    # Fresh accumulators at the start of each batch element's row sweep.
    @pl.when(h == 0)
    def _():
        loss_sum_ref[...] = jnp.zeros_like(loss_sum_ref)
        mask_sum_ref[...] = jnp.zeros_like(mask_sum_ref)

    loss_pix, valid_mask = _compute_loss_tile(
        k_ref, pred_ref, tz_ref, eps=eps, tile_h=tile_h)

    loss_sum_ref[...] = loss_sum_ref[...] + jnp.sum(loss_pix)
    mask_sum_ref[...] = mask_sum_ref[...] + jnp.sum(valid_mask)


def _map_kernel(k_ref, pred_ref, tz_ref, loss_map_ref, *, eps, tile_h):
    """reduction='none' path: write the per-pixel loss map only."""
    loss_pix, _ = _compute_loss_tile(
        k_ref, pred_ref, tz_ref, eps=eps, tile_h=tile_h)
    loss_map_ref[...] = loss_pix


def _pick_tile_h(H, W, pred_buf_budget_bytes=4 * 1024 * 1024):
    """Largest multiple-of-8 divisor of H whose 3-channel f32 tile fits budget."""
    max_rows = max(8, pred_buf_budget_bytes // (3 * W * 4))
    best = None
    t = 8
    while t <= min(H, max_rows):
        if H % t == 0:
            best = t
        t += 8
    if best is None:
        # No multiple-of-8 divisor in range: block dim == array dim is always legal.
        return H
    return best


def pointmap_consistency_loss(pred, target, gt_K,
                              reduction='mean', eps=-100.0, loss_weight=1.0):
    """JAX/Pallas equivalent of PointmapConsistencyLoss.forward.

    pred, target: (B, 3, H, W) float32   (NCHW, channels = X, Y, Z)
    gt_K:         (B, 3, 3)    float32   camera intrinsics
    """
    assert pred.shape == target.shape
    B, C, H, W = pred.shape
    assert C == 3

    pred = pred.astype(jnp.float32)
    target = target.astype(jnp.float32)
    gt_K = gt_K.astype(jnp.float32)

    # Flatten intrinsics to [cx, cy, 1/fx, 1/fy] per batch element.
    k_params = jnp.stack(
        [gt_K[:, 0, 2], gt_K[:, 1, 2],
         1.0 / gt_K[:, 0, 0], 1.0 / gt_K[:, 1, 1]], axis=-1)  # (B, 4)

    tile_h = _pick_tile_h(H, W)
    n_h = H // tile_h
    grid = (B, n_h)

    in_specs = [
        # intrinsics: whole (B, 4) array resident in SMEM
        pl.BlockSpec(memory_space=pltpu.MemorySpace.SMEM),
        # pred: all 3 channels, batch dim squeezed -> kernel ref (3, tH, W)
        pl.BlockSpec((None, 3, tile_h, W), lambda b, h: (b, 0, h, 0)),
        # target: Z channel only, batch+channel squeezed -> kernel ref (tH, W)
        pl.BlockSpec((None, None, tile_h, W), lambda b, h: (b, 2, h, 0)),
    ]

    if reduction in ('mean', 'sum'):
        kernel = functools.partial(_sum_kernel, eps=float(eps), tile_h=tile_h)
        loss_sum, mask_sum = pl.pallas_call(
            kernel,
            out_shape=(
                jax.ShapeDtypeStruct((B, 1, 1), jnp.float32),
                jax.ShapeDtypeStruct((B, 1, 1), jnp.float32),
            ),
            grid_spec=pltpu.PrefetchScalarGridSpec(
                num_scalar_prefetch=0,
                grid=grid,
                in_specs=in_specs,
                out_specs=[
                    pl.BlockSpec((None, 1, 1), lambda b, h: (b, 0, 0)),
                    pl.BlockSpec((None, 1, 1), lambda b, h: (b, 0, 0)),
                ],
            ),
            compiler_params=pltpu.CompilerParams(
                dimension_semantics=("parallel", "arbitrary")),
        )(k_params, pred, target)

        total_loss = jnp.sum(loss_sum)
        total_mask = jnp.sum(mask_sum)
        if reduction == 'mean':
            loss = total_loss / jnp.maximum(total_mask, 1.0)
        else:  # 'sum'
            loss = total_loss

    elif reduction == 'none':
        kernel = functools.partial(_map_kernel, eps=float(eps), tile_h=tile_h)
        loss = pl.pallas_call(
            kernel,
            out_shape=jax.ShapeDtypeStruct((B, H, W), jnp.float32),
            grid_spec=pltpu.PrefetchScalarGridSpec(
                num_scalar_prefetch=0,
                grid=grid,
                in_specs=in_specs,
                out_specs=pl.BlockSpec((None, tile_h, W), lambda b, h: (b, h, 0)),
            ),
            compiler_params=pltpu.CompilerParams(
                dimension_semantics=("parallel", "parallel")),
        )(k_params, pred, target)
    else:
        raise ValueError('Unsupported reduction type')

    # torch.nan_to_num(loss, nan=0.0) (posinf/neginf clamp to finite max/min
    # by default in both frameworks).
    loss = jnp.nan_to_num(loss, nan=0.0)
    # Note: the PyTorch forward never applies loss_weight; kept for parity.
    return loss


def _reference_jax(pred, target, gt_K, reduction='mean', eps=-100.0):
    pred_X, pred_Y, pred_Z = pred[:, 0], pred[:, 1], pred[:, 2]
    target_Z = target[:, 2]
    valid = (target_Z > eps).astype(jnp.float32)
    B, H, W = target_Z.shape
    cols = jnp.broadcast_to(jnp.arange(W, dtype=jnp.float32), (B, H, W))
    rows = jnp.broadcast_to(jnp.arange(H, dtype=jnp.float32)[:, None], (B, H, W))
    x = (cols - gt_K[:, 0, 2][:, None, None]) * pred_Z / gt_K[:, 0, 0][:, None, None]
    y = (rows - gt_K[:, 1, 2][:, None, None]) * pred_Z / gt_K[:, 1, 1][:, None, None]
    lX = jnp.abs(pred_X - x) * valid
    lY = jnp.abs(pred_Y - y) * valid
    if reduction == 'mean':
        loss = (lX + lY).sum() / jnp.maximum(valid.sum(), 1.0)
    elif reduction == 'sum':
        loss = (lX + lY).sum()
    else:
        loss = lX + lY
    return jnp.nan_to_num(loss, nan=0.0)


if __name__ == "__main__":
    key = jax.random.PRNGKey(0)
    B, C, H, W = 2, 3, 16, 16
    k1, k2 = jax.random.split(key)

    pred = jax.random.normal(k1, (B, C, H, W), dtype=jnp.float32)
    target = jax.random.normal(k2, (B, C, H, W), dtype=jnp.float32)

    # Deterministic synthetic intrinsics: fx=fy=20, cx=W/2, cy=H/2.
    gt_K = jnp.stack([
        jnp.array([[20.0, 0.0, W / 2.0],
                   [0.0, 20.0, H / 2.0],
                   [0.0, 0.0, 1.0]], dtype=jnp.float32)
        for _ in range(B)
    ], axis=0)

    # mean
    loss_mean = jax.block_until_ready(
        pointmap_consistency_loss(pred, target, gt_K, reduction='mean'))
    ref_mean = _reference_jax(pred, target, gt_K, reduction='mean')
    assert jnp.allclose(loss_mean, ref_mean, rtol=1e-5, atol=1e-5), (loss_mean, ref_mean)

    # sum
    loss_sum = jax.block_until_ready(
        pointmap_consistency_loss(pred, target, gt_K, reduction='sum'))
    ref_sum = _reference_jax(pred, target, gt_K, reduction='sum')
    assert jnp.allclose(loss_sum, ref_sum, rtol=1e-5, atol=1e-3), (loss_sum, ref_sum)

    # none
    loss_map = jax.block_until_ready(
        pointmap_consistency_loss(pred, target, gt_K, reduction='none'))
    ref_map = _reference_jax(pred, target, gt_K, reduction='none')
    assert jnp.allclose(loss_map, ref_map, rtol=1e-5, atol=1e-5)

    print("KERNEL_OK")
</pallas_src>

<mosaic_0001>
module attributes {stable_mosaic.version = 11 : i64} {
  func.func @_sum_kernel(%arg0: i32, %arg1: i32, %arg2: memref<2x4xf32, #tpu.memory_space<smem>>, %arg3: memref<1x3x16x16xf32, #tpu.memory_space<vmem>>, %arg4: memref<1x1x16x16xf32, #tpu.memory_space<vmem>>, %arg5: memref<1x1x1xf32, #tpu.memory_space<vmem>>, %arg6: memref<1x1x1xf32, #tpu.memory_space<vmem>>) attributes {dimension_semantics = [#tpu.dimension_semantics<parallel>, #tpu.dimension_semantics<arbitrary>], iteration_bounds = array<i64: 2, 1>, scalar_prefetch = 0 : i64, scratch_operands = 0 : i64, tpu.core_type = #tpu.core_type<tc>, window_params = [{transform_indices = @transform_0, window_bounds = array<i64: 2, 4>}, {transform_indices = @transform_1, window_bounds = array<i64: 1, 3, 16, 16>}, {transform_indices = @transform_2, window_bounds = array<i64: 1, 1, 16, 16>}, {transform_indices = @transform_3, window_bounds = array<i64: 1, 1, 1>}, {transform_indices = @transform_4, window_bounds = array<i64: 1, 1, 1>}]} {
    %c0_i32 = arith.constant 0 : i32
    %0 = arith.cmpi eq, %arg1, %c0_i32 : i32
    %1 = arith.extui %0 : i1 to i32
    %c0_i32_0 = arith.constant 0 : i32
    %2 = arith.cmpi ne, %1, %c0_i32_0 : i32
    scf.if %2 {
      %cst_31 = arith.constant 0.000000e+00 : f32
      %68 = vector.broadcast %cst_31 : f32 to vector<1x1xf32>
      %c0_32 = arith.constant 0 : index
      %c0_33 = arith.constant 0 : index
      %c0_34 = arith.constant 0 : index
      %69 = vector.load %arg5[%c0_32, %c0_33, %c0_34] : memref<1x1x1xf32, #tpu.memory_space<vmem>>, vector<1x1x1xf32>
      %70 = vector.shape_cast %69 : vector<1x1x1xf32> to vector<1x1xf32>
      %71 = vector.shape_cast %68 : vector<1x1xf32> to vector<1x1x1xf32>
      tpu.vector_store %arg5[%c0_32, %c0_33, %c0_34], %71 {strides = array<i32>} : memref<1x1x1xf32, #tpu.memory_space<vmem>>, vector<1x1x1xf32>,
      %cst_35 = arith.constant 0.000000e+00 : f32
      %72 = vector.broadcast %cst_35 : f32 to vector<1x1xf32>
      %c0_36 = arith.constant 0 : index
      %c0_37 = arith.constant 0 : index
      %c0_38 = arith.constant 0 : index
      %73 = vector.load %arg6[%c0_36, %c0_37, %c0_38] : memref<1x1x1xf32, #tpu.memory_space<vmem>>, vector<1x1x1xf32>
      %74 = vector.shape_cast %73 : vector<1x1x1xf32> to vector<1x1xf32>
      %75 = vector.shape_cast %72 : vector<1x1xf32> to vector<1x1x1xf32>
      tpu.vector_store %arg6[%c0_36, %c0_37, %c0_38], %75 {strides = array<i32>} : memref<1x1x1xf32, #tpu.memory_space<vmem>>, vector<1x1x1xf32>,
    } else {
    }
    %c0 = arith.constant 0 : index
    %c0_1 = arith.constant 0 : index
    %c0_2 = arith.constant 0 : index
    %c0_3 = arith.constant 0 : index
    %3 = vector.load %arg3[%c0, %c0_1, %c0_2, %c0_3] : memref<1x3x16x16xf32, #tpu.memory_space<vmem>>, vector<1x1x16x16xf32>
    %4 = vector.shape_cast %3 : vector<1x1x16x16xf32> to vector<16x16xf32>
    %c0_4 = arith.constant 0 : index
    %c1 = arith.constant 1 : index
    %c0_5 = arith.constant 0 : index
    %c0_6 = arith.constant 0 : index
    %5 = vector.load %arg3[%c0_4, %c1, %c0_5, %c0_6] : memref<1x3x16x16xf32, #tpu.memory_space<vmem>>, vector<1x1x16x16xf32>
    %6 = vector.shape_cast %5 : vector<1x1x16x16xf32> to vector<16x16xf32>
    %c0_7 = arith.constant 0 : index
    %c2 = arith.constant 2 : index
    %c0_8 = arith.constant 0 : index
    %c0_9 = arith.constant 0 : index
    %7 = vector.load %arg3[%c0_7, %c2, %c0_8, %c0_9] : memref<1x3x16x16xf32, #tpu.memory_space<vmem>>, vector<1x1x16x16xf32>
    %8 = vector.shape_cast %7 : vector<1x1x16x16xf32> to vector<16x16xf32>
    %c0_10 = arith.constant 0 : index
    %c0_11 = arith.constant 0 : index
    %c0_12 = arith.constant 0 : index
    %c0_13 = arith.constant 0 : index
    %9 = vector.load %arg4[%c0_10, %c0_11, %c0_12, %c0_13] : memref<1x1x16x16xf32, #tpu.memory_space<vmem>>, vector<1x1x16x16xf32>
    %10 = vector.shape_cast %9 : vector<1x1x16x16xf32> to vector<16x16xf32>
    %11 = arith.index_cast %arg0 : i32 to index
    %c0_14 = arith.constant 0 : index
    %12 = memref.load %arg2[%11, %c0_14] : memref<2x4xf32, #tpu.memory_space<smem>>
    %13 = arith.index_cast %arg0 : i32 to index
    %c1_15 = arith.constant 1 : index
    %14 = memref.load %arg2[%13, %c1_15] : memref<2x4xf32, #tpu.memory_space<smem>>
    %15 = arith.index_cast %arg0 : i32 to index
    %c2_16 = arith.constant 2 : index
    %16 = memref.load %arg2[%15, %c2_16] : memref<2x4xf32, #tpu.memory_space<smem>>
    %17 = arith.index_cast %arg0 : i32 to index
    %c3 = arith.constant 3 : index
    %18 = memref.load %arg2[%17, %c3] : memref<2x4xf32, #tpu.memory_space<smem>>
    %cst = arith.constant -1.000000e+02 : f32
    %19 = vector.broadcast %cst : f32 to vector<16x16xf32>
    %20 = arith.cmpf ogt, %10, %19 : vector<16x16xf32>
    %21 = arith.extui %20 : vector<16x16xi1> to vector<16x16xi32>
    %22 = arith.sitofp %21 : vector<16x16xi32> to vector<16x16xf32>
    %23 = tpu.iota {dimensions = array<i32: 1>} : vector<16x16xi32>
    %24 = arith.sitofp %23 : vector<16x16xi32> to vector<16x16xf32>
    %25 = tpu.iota {dimensions = array<i32: 0>} : vector<16x16xi32>
    %c16_i32 = arith.constant 16 : i32
    %26 = arith.muli %arg1, %c16_i32 : i32
    %27 = vector.broadcast %26 : i32 to vector<16x16xi32>
    %28 = arith.addi %25, %27 : vector<16x16xi32>
    %29 = arith.sitofp %28 : vector<16x16xi32> to vector<16x16xf32>
    %30 = vector.broadcast %12 : f32 to vector<16x16xf32>
    %31 = arith.subf %24, %30 : vector<16x16xf32>
    %32 = arith.mulf %31, %8 : vector<16x16xf32>
    %33 = vector.broadcast %16 : f32 to vector<16x16xf32>
    %34 = arith.mulf %32, %33 : vector<16x16xf32>
    %35 = vector.broadcast %14 : f32 to vector<16x16xf32>
    %36 = arith.subf %29, %35 : vector<16x16xf32>
    %37 = arith.mulf %36, %8 : vector<16x16xf32>
    %38 = vector.broadcast %18 : f32 to vector<16x16xf32>
    %39 = arith.mulf %37, %38 : vector<16x16xf32>
    %40 = arith.subf %4, %34 : vector<16x16xf32>
    %41 = math.absf %40 : vector<16x16xf32>
    %42 = arith.subf %6, %39 : vector<16x16xf32>
    %43 = math.absf %42 : vector<16x16xf32>
    %44 = arith.addf %41, %43 : vector<16x16xf32>
    %45 = arith.mulf %44, %22 : vector<16x16xf32>
    %c0_17 = arith.constant 0 : index
    %c0_18 = arith.constant 0 : index
    %c0_19 = arith.constant 0 : index
    %46 = vector.load %arg5[%c0_17, %c0_18, %c0_19] : memref<1x1x1xf32, #tpu.memory_space<vmem>>, vector<1x1x1xf32>
    %47 = vector.shape_cast %46 : vector<1x1x1xf32> to vector<1x1xf32>
    %48 = vector.shape_cast %45 : vector<16x16xf32> to vector<1x16x16xf32>
    %cst_20 = arith.constant dense<0.000000e+00> : vector<1xf32>
    %49 = vector.multi_reduction <add>, %48, %cst_20 [1, 2] : vector<1x16x16xf32> to vector<1xf32>
    %50 = vector.shape_cast %49 : vector<1xf32> to vector<1x1x1xf32>
    %51 = vector.extract %50[0, 0, 0] : f32 from vector<1x1x1xf32>
    %52 = vector.broadcast %51 : f32 to vector<1x1xf32>
    %53 = arith.addf %47, %52 : vector<1x1xf32>
    %c0_21 = arith.constant 0 : index
    %c0_22 = arith.constant 0 : index
    %c0_23 = arith.constant 0 : index
    %54 = vector.load %arg5[%c0_21, %c0_22, %c0_23] : memref<1x1x1xf32, #tpu.memory_space<vmem>>, vector<1x1x1xf32>
    %55 = vector.shape_cast %54 : vector<1x1x1xf32> to vector<1x1xf32>
    %56 = vector.shape_cast %53 : vector<1x1xf32> to vector<1x1x1xf32>
    tpu.vector_store %arg5[%c0_21, %c0_22, %c0_23], %56 {strides = array<i32>} : memref<1x1x1xf32, #tpu.memory_space<vmem>>, vector<1x1x1xf32>,
    %c0_24 = arith.constant 0 : index
    %c0_25 = arith.constant 0 : index
    %c0_26 = arith.constant 0 : index
    %57 = vector.load %arg6[%c0_24, %c0_25, %c0_26] : memref<1x1x1xf32, #tpu.memory_space<vmem>>, vector<1x1x1xf32>
    %58 = vector.shape_cast %57 : vector<1x1x1xf32> to vector<1x1xf32>
    %59 = vector.shape_cast %22 : vector<16x16xf32> to vector<1x16x16xf32>
    %cst_27 = arith.constant dense<0.000000e+00> : vector<1xf32>
    %60 = vector.multi_reduction <add>, %59, %cst_27 [1, 2] : vector<1x16x16xf32> to vector<1xf32>
    %61 = vector.shape_cast %60 : vector<1xf32> to vector<1x1x1xf32>
    %62 = vector.extract %61[0, 0, 0] : f32 from vector<1x1x1xf32>
    %63 = vector.broadcast %62 : f32 to vector<1x1xf32>
    %64 = arith.addf %58, %63 : vector<1x1xf32>
    %c0_28 = arith.constant 0 : index
    %c0_29 = arith.constant 0 : index
    %c0_30 = arith.constant 0 : index
    %65 = vector.load %arg6[%c0_28, %c0_29, %c0_30] : memref<1x1x1xf32, #tpu.memory_space<vmem>>, vector<1x1x1xf32>
    %66 = vector.shape_cast %65 : vector<1x1x1xf32> to vector<1x1xf32>
    %67 = vector.shape_cast %64 : vector<1x1xf32> to vector<1x1x1xf32>
    tpu.vector_store %arg6[%c0_28, %c0_29, %c0_30], %67 {strides = array<i32>} : memref<1x1x1xf32, #tpu.memory_space<vmem>>, vector<1x1x1xf32>,
    return
  }
  func.func @transform_0(%arg0: i32, %arg1: i32) -> (i32, i32) {
    %c0_i32 = arith.constant 0 : i32
    %c0_i32_0 = arith.constant 0 : i32
    %c0_i32_1 = arith.constant 0 : i32
    return %c0_i32, %c0_i32_0 : i32, i32
  }
  func.func @transform_1(%arg0: i32, %arg1: i32) -> (i32, i32, i32, i32) {
    %c0_i32 = arith.constant 0 : i32
    %c0_i32_0 = arith.constant 0 : i32
    %c0_i32_1 = arith.constant 0 : i32
    return %arg0, %c0_i32, %arg1, %c0_i32_0 : i32, i32, i32, i32
  }
  func.func @transform_2(%arg0: i32, %arg1: i32) -> (i32, i32, i32, i32) {
    %c2_i32 = arith.constant 2 : i32
    %c0_i32 = arith.constant 0 : i32
    %c0_i32_0 = arith.constant 0 : i32
    return %arg0, %c2_i32, %arg1, %c0_i32 : i32, i32, i32, i32
  }
  func.func @transform_3(%arg0: i32, %arg1: i32) -> (i32, i32, i32) {
    %c0_i32 = arith.constant 0 : i32
    %c0_i32_0 = arith.constant 0 : i32
    %c0_i32_1 = arith.constant 0 : i32
    return %arg0, %c0_i32, %c0_i32_0 : i32, i32, i32
  }
  func.func @transform_4(%arg0: i32, %arg1: i32) -> (i32, i32, i32) {
    %c0_i32 = arith.constant 0 : i32
    %c0_i32_0 = arith.constant 0 : i32
    %c0_i32_1 = arith.constant 0 : i32
    return %arg0, %c0_i32, %c0_i32_0 : i32, i32, i32
  }
}

</mosaic_0001>

<llo_original>
// kernel: tpu_custom_call.1
$region0: #{tpu_custom_call.1}
  #allocation0 [shape = 'u32[]', space=smem, size = 0x4, offset = 0x4, fixed_abs, tag = 'smem constant byte address 0x4 - core index']
  #allocation1 [shape = 'u32[144,128]{1,0:T(1,128)}', space=vmem, size = 0x12000, scoped, tag = 'internal scratch']
  %s0 = inlined_call_operand.hbm [shape: f32[2,4], index: 0, kind: input, shape index: {}]
  %s1 = inlined_call_operand.hbm [shape: f32[2,3,16,16], index: 1, kind: input, shape index: {}]
  %s2 = inlined_call_operand.hbm [shape: f32[2,3,16,16], index: 2, kind: input, shape index: {}]
  %s3 = inlined_call_operand.vmem [shape: f32[2,1,1], index: 3, kind: output, shape index: {0}]
  %s4 = inlined_call_operand.vmem [shape: f32[2,1,1], index: 4, kind: output, shape index: {1}]
  %5 = xla_tuple %s3, %s4
  %s6 = sld [smem:[#allocation0]]
  $region69: #{tpu_custom_call.1} parent=0
    _
  %s8 = ssub.s32 1, %s6
  %s9 = scalar_select 0, %s8, %s6
  $region1: #{tpu_custom_call.1} parent=0
    #allocation2 [shape = 'u8[1024]{0}', space=smem, size = 0x400, scoped, tag = 'input window, operand 0, single buffered']
    #allocation3 [shape = 's32[2]{0}', space=sflag, size = 0x8, scoped, tag = 'scoped memory for tpu_custom_call.1']
    #allocation4 [shape = 's32[2]{0}', space=sflag, size = 0x8, scoped, tag = 'scoped memory for tpu_custom_call.1']
    #allocation5 [shape = 'u8[49152]{0}', space=vmem, size = 0xc000, scoped, tag = 'input window, operand 1']
    #allocation6 [shape = 'u8[16384]{0}', space=vmem, size = 0x4000, scoped, tag = 'input window, operand 2']
    #allocation7 [shape = 's32[2]{0}', space=sflag, size = 0x8, scoped, tag = 'scoped memory for tpu_custom_call.1']
    %10 = vsyncpa [#allocation4], 0
    %11 = vsyncpa [#allocation3], 0
    %s12 = scalar_lea.sflag [#allocation3], 1
    %13 = vsyncpa %s12, 0
    %14 = vsyncpa [#allocation7], 0
    %s15 = scalar_lea.sflag [#allocation7], 1
    %16 = vsyncpa %s15, 0
    loop: start=0, step=1, limit=4
    $region2: #{tpu_custom_call.1} parent=1 // loop_pre_header
      _
    $region3: #{tpu_custom_call.1} parent=1 // loop_header
      %s18 = sphi 0, %s22
      %p19 = scmp.ge.s32.totalorder %s18, 4
      %s25 = sphi 0, %s37
      %s26 = sphi 0, %s33
      %s27 = sphi 0, %s25
      %s28 = sphi 0, %s26
      %s29 = sphi 0, %s27
      %s30 = sphi 0, %s28
      %s38 = sphi 0, %s38
      %s40 = sphi 0, %s38
      %s41 = sphi 0, %s40
      %s55 = sphi 0, %s41
      %s63 = sphi 0, %s65
      %s66 = sphi 0, %s63
      %s67 = sphi 0, %s66
      %s83 = sphi 0, %s67
      %s91 = sphi 0, %s93
      %s94 = sphi 0, %s91
      %s95 = sphi 0, %s94
      %s111 = sphi 0, %s95
      %s117 = sphi 0, %s119
      %s120 = sphi 0, %s117
      %s121 = sphi 0, %s120
      %s137 = sphi 0, %s121
      %s143 = sphi 0, %s145
      %s146 = sphi 0, %s143
      %s147 = sphi 0, %s146
      %s163 = sphi 0, %s147
    $region4: #{tpu_custom_call.1} parent=1 // loop_header_branch
      %21 = sbr.rel (%p19) target = $region8
    $region5: #{tpu_custom_call.1} parent=1 // loop_body
      %s23 = ssub.s32 %s18, 1
      %s24 = ssub.s32 %s18, 2
      %s31 = sadd.s32 1, %s26
      %p32 = scmp.ge.s32.totalorder %s31, 1
      %s33 = scalar_select %p32, 0, %s31
      %s34 = sadd.s32 1, %s25
      %s35 = scalar_select %p32, %s34, %s25
      %p36 = scmp.ge.s32.totalorder %s35, 2
      %s37 = scalar_select %p36, 0, %s35
      %s39 = sadd.s32 %s38, 1
      %p42 = scmp.eq.s32.totalorder %s18, 1
      %p43 = scmp.ne.s32.totalorder %s38, %s40
      %p44 = scmp.eq.s32.totalorder %s18, 0
      %p45 = por %p43, %p44
      %p46 = scmp.ne.s32.totalorder %s38, %s40
      %p47 = scmp.eq.s32.totalorder %s23, 1
      %p48 = por %p46, %p47
      %p49 = scmp.ne.s32.totalorder %s40, %s41
      %p50 = scmp.eq.s32.totalorder %s23, 0
      %p51 = por %p49, %p50
      %p52 = scmp.ne.s32.totalorder %s40, %s41
      %p53 = scmp.eq.s32.totalorder %s24, 1
      %p54 = por %p52, %p53
      %p56 = scmp.ne.s32.totalorder %s41, %s55
      %p57 = scmp.eq.s32.totalorder %s24, 0
      %p58 = por %p56, %p57
      %s59 = ssub.s32 %s25, %s37
      %s60 = ssub.s32 %s26, %s33
      %s61 = sor.u32 %s59, %s60
      %p62 = scmp.eq.s32.totalorder %s61, 0
      %s64 = sadd.s32 %s63, 1
      %s65 = scalar_select %p62, %s63, %s64
      %p68 = pneg %p62
      %p69 = scmp.eq.s32.totalorder %s18, 1
      %p70 = por %p68, %p69
      %p71 = scmp.ne.s32.totalorder %s63, %s66
      %p72 = scmp.eq.s32.totalorder %s18, 0
      %p73 = por %p71, %p72
      %p74 = scmp.ne.s32.totalorder %s63, %s66
      %p75 = scmp.eq.s32.totalorder %s23, 1
      %p76 = por %p74, %p75
      %p77 = scmp.ne.s32.totalorder %s66, %s67
      %p78 = scmp.eq.s32.totalorder %s23, 0
      %p79 = por %p77, %p78
      %p80 = scmp.ne.s32.totalorder %s66, %s67
      %p81 = scmp.eq.s32.totalorder %s24, 1
      %p82 = por %p80, %p81
      %p84 = scmp.ne.s32.totalorder %s67, %s83
      %p85 = scmp.eq.s32.totalorder %s24, 0
      %p86 = por %p84, %p85
      %s87 = ssub.s32 %s25, %s37
      %s88 = ssub.s32 %s26, %s33
      %s89 = sor.u32 %s87, %s88
      %p90 = scmp.eq.s32.totalorder %s89, 0
      %s92 = sadd.s32 %s91, 1
      %s93 = scalar_select %p90, %s91, %s92
      %p96 = pneg %p90
      %p97 = scmp.eq.s32.totalorder %s18, 1
      %p98 = por %p96, %p97
      %p99 = scmp.ne.s32.totalorder %s91, %s94
      %p100 = scmp.eq.s32.totalorder %s18, 0
      %p101 = por %p99, %p100
      %p102 = scmp.ne.s32.totalorder %s91, %s94
      %p103 = scmp.eq.s32.totalorder %s23, 1
      %p104 = por %p102, %p103
      %p105 = scmp.ne.s32.totalorder %s94, %s95
      %p106 = scmp.eq.s32.totalorder %s23, 0
      %p107 = por %p105, %p106
      %p108 = scmp.ne.s32.totalorder %s94, %s95
      %p109 = scmp.eq.s32.totalorder %s24, 1
      %p110 = por %p108, %p109
      %p112 = scmp.ne.s32.totalorder %s95, %s111
      %p113 = scmp.eq.s32.totalorder %s24, 0
      %p114 = por %p112, %p113
      %s115 = ssub.s32 %s25, %s37
      %p116 = scmp.eq.s32.totalorder %s115, 0
      %s118 = sadd.s32 %s117, 1
      %s119 = scalar_select %p116, %s117, %s118
      %p122 = pneg %p116
      %p123 = scmp.eq.s32.totalorder %s18, 1
      %p124 = por %p122, %p123
      %p125 = scmp.ne.s32.totalorder %s117, %s120
      %p126 = scmp.eq.s32.totalorder %s18, 0
      %p127 = por %p125, %p126
      %p128 = scmp.ne.s32.totalorder %s117, %s120
      %p129 = scmp.eq.s32.totalorder %s23, 1
      %p130 = por %p128, %p129
      %p131 = scmp.ne.s32.totalorder %s120, %s121
      %p132 = scmp.eq.s32.totalorder %s23, 0
      %p133 = por %p131, %p132
      %p134 = scmp.ne.s32.totalorder %s120, %s121
      %p135 = scmp.eq.s32.totalorder %s24, 1
      %p136 = por %p134, %p135
      %p138 = scmp.ne.s32.totalorder %s121, %s137
      %p139 = scmp.eq.s32.totalorder %s24, 0
      %p140 = por %p138, %p139
      %s141 = ssub.s32 %s25, %s37
      %p142 = scmp.eq.s32.totalorder %s141, 0
      %s144 = sadd.s32 %s143, 1
      %s145 = scalar_select %p142, %s143, %s144
      %p148 = pneg %p142
      %p149 = scmp.eq.s32.totalorder %s18, 1
      %p150 = por %p148, %p149
      %p151 = scmp.ne.s32.totalorder %s143, %s146
      %p152 = scmp.eq.s32.totalorder %s18, 0
      %p153 = por %p151, %p152
      %p154 = scmp.ne.s32.totalorder %s143, %s146
      %p155 = scmp.eq.s32.totalorder %s23, 1
      %p156 = por %p154, %p155
      %p157 = scmp.ne.s32.totalorder %s146, %s147
      %p158 = scmp.eq.s32.totalorder %s23, 0
      %p159 = por %p157, %p158
      %p160 = scmp.ne.s32.totalorder %s146, %s147
      %p161 = scmp.eq.s32.totalorder %s24, 1
      %p162 = por %p160, %p161
      %p164 = scmp.ne.s32.totalorder %s147, %s163
      %p165 = scmp.eq.s32.totalorder %s24, 0
      %p166 = por %p164, %p165
      %p167 = scmp.le.s32.totalorder 1, %s18
      %p168 = scmp.lt.s32.totalorder %s18, 3
      %p169 = pnand %p167, %p168
      %p170 = pneg %p169
      // Predicated region
      $region9: #{tpu_custom_call.1} parent=5 // pred_check
        _
      $region10: #{tpu_custom_call.1} parent=5 // pred_check_branch
        %172 = sbr.rel (%p169) target = $region12
      $region11: #{tpu_custom_call.1} parent=5 // pred_region
        %s173 = ssub.s32 %s18, 1
        // Predicated region
        $region13: #{tpu_custom_call.1} parent=11 // pred_check
          %p174 = pneg %p51
        $region14: #{tpu_custom_call.1} parent=11 // pred_check_branch
          %176 = sbr.rel (%p174) target = $region16
        $region15: #{tpu_custom_call.1} parent=11 // pred_region
          %s178 = ssub.s32 32, 32
          %179 = vsyncadd [#allocation4], %s178
          %182 = dma.hbm_to_smem %s0, 32, [#allocation2], [#allocation4]
        $region16: #{tpu_custom_call.1} parent=11 // pred_fallthru
          _
      $region12: #{tpu_custom_call.1} parent=5 // pred_fallthru
        _
      %p183 = scmp.lt.s32.totalorder %s18, 2
      // Predicated region
      $region17: #{tpu_custom_call.1} parent=5 // pred_check
        %p184 = pneg %p183
      $region18: #{tpu_custom_call.1} parent=5 // pred_check_branch
        %186 = sbr.rel (%p184) target = $region20
      $region19: #{tpu_custom_call.1} parent=5 // pred_region
        // Predicated region
        $region21: #{tpu_custom_call.1} parent=19 // pred_check
          %p187 = pneg %p73
        $region22: #{tpu_custom_call.1} parent=19 // pred_check_branch
          %189 = sbr.rel (%p187) target = $region24
        $region23: #{tpu_custom_call.1} parent=19 // pred_region
          %s190 = sand.u32 %s63, 1
          %s191 = scalar_lea.sflag [#allocation3], %s190
          %s192 = sand.u32 %s63, 1
          %s193 = smul.addr %s192, 48
          %s194 = scalar_lea.vmem [#allocation5], %s193
          %s195 = smul.u32 2, %s26
          %s197 = ssub.s32 768, 768
          %198 = vsyncadd %s191, %s197
          %s199 = smul.addr %s25, 6
          %s200 = sadd.s32 %s195, %s199
          %s201 = smul.addr %s200, 128
          %s202 = scalar_lea.hbm %s1, %s201
          %s203 = sshll.u32 %s194, 4
          %s204 = int_to_ptr.vmem [resolvable:$true] %s203
          %209 = dma.hbm_to_vmem [thread:$0]  %s202, 768, %s204, %s191, 128, 128, 8
        $region24: #{tpu_custom_call.1} parent=19 // pred_fallthru
          _
        // Predicated region
        $region25: #{tpu_custom_call.1} parent=19 // pred_check
          %p210 = pneg %p101
        $region26: #{tpu_custom_call.1} parent=19 // pred_check_branch
          %212 = sbr.rel (%p210) target = $region28
        $region27: #{tpu_custom_call.1} parent=19 // pred_region
          %s213 = sand.u32 %s91, 1
          %s214 = scalar_lea.sflag [#allocation7], %s213
          %s215 = sand.u32 %s91, 1
          %s216 = smul.addr %s215, 16
          %s217 = scalar_lea.vmem [#allocation6], %s216
          %s218 = smul.u32 2, %s26
          %s220 = ssub.s32 256, 256
          %221 = vsyncadd %s214, %s220
          %s222 = sadd.s32 %s218, 4
          %s223 = smul.addr %s25, 6
          %s224 = sadd.s32 %s222, %s223
          %s225 = smul.addr %s224, 128
          %s226 = scalar_lea.hbm %s2, %s225
          %s227 = sshll.u32 %s217, 4
          %s228 = int_to_ptr.vmem [resolvable:$true] %s227
          %233 = dma.hbm_to_vmem [thread:$0]  %s226, 256, %s228, %s214, 128, 128, 8
        $region28: #{tpu_custom_call.1} parent=19 // pred_fallthru
          _
      $region20: #{tpu_custom_call.1} parent=5 // pred_fallthru
        _
      %p234 = scmp.le.s32.totalorder 1, %s18
      %p235 = scmp.lt.s32.totalorder %s18, 3
      %p236 = pnand %p234, %p235
      %p237 = pneg %p236
      // Predicated region
      $region29: #{tpu_custom_call.1} parent=5 // pred_check
        _
      $region30: #{tpu_custom_call.1} parent=5 // pred_check_branch
        %239 = sbr.rel (%p236) target = $region32
      $region31: #{tpu_custom_call.1} parent=5 // pred_region
        %s240 = ssub.s32 %s18, 1
        // Predicated region
        $region33: #{tpu_custom_call.1} parent=31 // pred_check
          %p241 = pneg %p51
        $region34: #{tpu_custom_call.1} parent=31 // pred_check_branch
          %243 = sbr.rel (%p241) target = $region36
        $region35: #{tpu_custom_call.1} parent=31 // pred_region
          %244 = dma.done [#allocation4], 32
        $region36: #{tpu_custom_call.1} parent=31 // pred_fallthru
          _
        %s245 = sand.u32 %s66, 1
        %s246 = scalar_lea.sflag [#allocation3], %s245
        %s247 = sand.u32 %s66, 1
        %s248 = smul.addr %s247, 48
        %s249 = scalar_lea.vmem [#allocation5], %s248
        // Predicated region
        $region37: #{tpu_custom_call.1} parent=31 // pred_check
          %p250 = pneg %p79
        $region38: #{tpu_custom_call.1} parent=31 // pred_check_branch
          %252 = sbr.rel (%p250) target = $region40
        $region39: #{tpu_custom_call.1} parent=31 // pred_region
          %253 = dma.done %s246, 768
        $region40: #{tpu_custom_call.1} parent=31 // pred_fallthru
          _
        %s254 = sand.u32 %s94, 1
        %s255 = scalar_lea.sflag [#allocation7], %s254
        %s256 = sand.u32 %s94, 1
        %s257 = smul.addr %s256, 16
        %s258 = scalar_lea.vmem [#allocation6], %s257
        // Predicated region
        $region41: #{tpu_custom_call.1} parent=31 // pred_check
          %p259 = pneg %p107
        $region42: #{tpu_custom_call.1} parent=31 // pred_check_branch
          %261 = sbr.rel (%p259) target = $region44
        $region43: #{tpu_custom_call.1} parent=31 // pred_region
          %262 = dma.done %s255, 256
        $region44: #{tpu_custom_call.1} parent=31 // pred_fallthru
          _
        %263 = sfence
        %p264 = pneg %p51
        %p265 = pneg %p48
        %s266 = sand.u32 %s66, 1
        %s267 = scalar_lea.sflag [#allocation3], %s266
        %s268 = sand.u32 %s66, 1
        %s269 = smul.addr %s268, 48
        %s270 = scalar_lea.vmem [#allocation5], %s269
        %p271 = pneg %p79
        %p272 = pneg %p76
        %s273 = sand.u32 %s94, 1
        %s274 = scalar_lea.sflag [#allocation7], %s273
        %s275 = sand.u32 %s94, 1
        %s276 = smul.addr %s275, 16
        %s277 = scalar_lea.vmem [#allocation6], %s276
        %p278 = pneg %p107
        %p279 = pneg %p104
        %p280 = pneg %p133
        %p281 = pneg %p130
        %p282 = scmp.lt.s32.totalorder %s27, 1
        %s283 = scalar_select %p282, %s27, 1
        %s284 = scalar_lea.vmem %s3, %s283
        %p285 = pneg %p159
        %p286 = pneg %p156
        %p287 = scmp.lt.s32.totalorder %s27, 1
        %s288 = scalar_select %p287, %s27, 1
        %s289 = scalar_lea.vmem %s4, %s288
        %s290 = smul.u32 2, %s28
        %s291 = smul.u32 2, %s28
        %p292 = scmp.lt.s32.totalorder %s27, 1
        %s293 = scalar_select %p292, %s27, 1
        %s294 = scalar_lea.vmem %s3, %s293
        %p295 = scmp.lt.s32.totalorder %s27, 1
        %s296 = scalar_select %p295, %s27, 1
        %s297 = scalar_lea.vmem %s4, %s296
        %p298 = scmp.eq.s32.totalorder %s28, 0
        // Predicated region
        $region45: #{tpu_custom_call.1} parent=31 // pred_check
          %p299 = pneg %p298
        $region46: #{tpu_custom_call.1} parent=31 // pred_check_branch
          %301 = sbr.rel (%p299) target = $region48
        $region47: #{tpu_custom_call.1} parent=31 // pred_region
          %vm302 = vcmask 0
          %303 = vst.msk [vmem:[%s294] sm:$0x1] %vm302, 0.0
          %304 = vst.msk [vmem:[%s297] sm:$0x1] %vm302, 0.0
        $region48: #{tpu_custom_call.1} parent=31 // pred_fallthru
          _
        %v305 = vld [vmem:[%s249] sm:$0xff]
        %v306 = vld [vmem:[%s249 + $0x8] sm:$0xff]
        %s307 = scalar_lea.vmem %s249, 16 [#allocation5]
        %v308 = vld [vmem:[%s307] sm:$0xff]
        %v309 = vld [vmem:[%s307 + $0x8] sm:$0xff]
        %s310 = scalar_lea.vmem %s249, 32 [#allocation5]
        %v311 = vld [vmem:[%s310] sm:$0xff]
        %v312 = vld [vmem:[%s310 + $0x8] sm:$0xff]
        %v313 = vld [vmem:[%s258] sm:$0xff]
        %v314 = vld [vmem:[%s258 + $0x8] sm:$0xff]
        %s315 = smul.u32 %s27, 128
        %s316 = sld [smem:[#allocation2 + %s315]]
        %s317 = sadd.s32 %s315, 1
        %s318 = sld [smem:[#allocation2 + %s317]]
        %s319 = sadd.s32 %s315, 2
        %s320 = sld [smem:[#allocation2 + %s319]]
        %s321 = sadd.s32 %s315, 3
        %s322 = sld [smem:[#allocation2 + %s321]]
        %vm323 = vcmp.gt.f32.partialorder %v313, -100.0
        %vm324 = vcmp.gt.f32.partialorder %v314, -100.0
        %v325 = vsel %vm323, 1, 0
        %v326 = vsel %vm324, 1, 0
        %v327 = vcvt.s32.f32 %v325
        %v328 = vcvt.s32.f32 %v326
        %v329 = vlaneseq
        %v330 = vand.u32 %v329, 127
        %v331 = vcvt.s32.f32 %v330
        %v332 = vlaneseq
        %v333 = vshrl.u32 %v332, 7
        %v334 = vadd.s32 %v333, 8
        %s335 = smul.u32 %s28, 16
        %v336 = vstv %s335
        %v337 = vadd.s32 %v333, %v336
        %v338 = vadd.s32 %v334, %v336
        %v339 = vcvt.s32.f32 %v337
        %v340 = vcvt.s32.f32 %v338
        %v341 = vstv %s316
        %v342 = vsub.f32 %v331, %v341
        %v343 = vmul.f32 %v342, %v311
        %v344 = vmul.f32 %v342, %v312
        %v345 = vstv %s320
        %v346 = vmul.f32 %v343, %v345
        %v347 = vmul.f32 %v344, %v345
        %v348 = vstv %s318
        %v349 = vsub.f32 %v339, %v348
        %v350 = vsub.f32 %v340, %v348
        %v351 = vmul.f32 %v349, %v311
        %v352 = vmul.f32 %v350, %v312
        %v353 = vstv %s322
        %v354 = vmul.f32 %v351, %v353
        %v355 = vmul.f32 %v352, %v353
        %v356 = vsub.f32 %v305, %v346
        %v357 = vsub.f32 %v306, %v347
        %v358 = vand.u32 2147483647, %v356
        %v359 = vand.u32 2147483647, %v357
        %v360 = vsub.f32 %v308, %v354
        %v361 = vsub.f32 %v309, %v355
        %v362 = vand.u32 2147483647, %v360
        %v363 = vand.u32 2147483647, %v361
        %v364 = vadd.f32 %v358, %v362
        %v365 = vadd.f32 %v359, %v363
        %v366 = vmul.f32 %v364, %v327
        %v367 = vmul.f32 %v365, %v328
        %v368 = vld [vmem:[%s294] sm:$0x1]
        %vm369 = vcmask 130048
        %v370 = vsel %vm369, %v366, 0.0
        %v371 = vsel %vm369, %v367, 0.0
        %v372 = vadd.f32 %v370, %v371
        %373 = vadd.xlane.f32.xlu0 %v372
        %v374 = vpop.xlane.xlu0 %373
        %v375 = vrot.slane %v374, 4
        %v376 = vadd.f32 %v374, %v375
        %v377 = vrot.slane %v376, 2
        %v378 = vadd.f32 %v376, %v377
        %v379 = vrot.slane %v378, 1
        %v380 = vadd.f32 %v378, %v379
        %s381 = vtos %v380
        %v382 = vstv %s381
        %v383 = vadd.f32 %v368, %v382
        %vm384 = vcmask 0
        %385 = vst.msk [vmem:[%s294] sm:$0x1] %vm384, %v383
        %v386 = vld [vmem:[%s297] sm:$0x1]
        %v387 = vsel %vm369, %v327, 0.0
        %v388 = vsel %vm369, %v328, 0.0
        %v389 = vadd.f32 %v387, %v388
        %390 = vadd.xlane.f32.xlu0 %v389
        %v391 = vpop.xlane.xlu0 %390
        %v392 = vrot.slane %v391, 4
        %v393 = vadd.f32 %v391, %v392
        %v394 = vrot.slane %v393, 2
        %v395 = vadd.f32 %v393, %v394
        %v396 = vrot.slane %v395, 1
        %v397 = vadd.f32 %v395, %v396
        %s398 = vtos %v397
        %v399 = vstv %s398
        %v400 = vadd.f32 %v386, %v399
        %401 = vst.msk [vmem:[%s297] sm:$0x1] %vm384, %v400
        %p402 = scmp.lt.s32.totalorder %s27, 1
        %s403 = scalar_select %p402, %s27, 1
        %s404 = scalar_lea.vmem %s3, %s403
        %p405 = scmp.lt.s32.totalorder %s27, 1
        %s406 = scalar_select %p405, %s27, 1
        %s407 = scalar_lea.vmem %s4, %s406
        // Predicated region
        $region49: #{tpu_custom_call.1} parent=31 // pred_check
          %p408 = pneg %p130
        $region50: #{tpu_custom_call.1} parent=31 // pred_check_branch
          %410 = sbr.rel (%p408) target = $region52
        $region51: #{tpu_custom_call.1} parent=31 // pred_region
          _
        $region52: #{tpu_custom_call.1} parent=31 // pred_fallthru
          _
        // Predicated region
        $region53: #{tpu_custom_call.1} parent=31 // pred_check
          %p411 = pneg %p156
        $region54: #{tpu_custom_call.1} parent=31 // pred_check_branch
          %413 = sbr.rel (%p411) target = $region56
        $region55: #{tpu_custom_call.1} parent=31 // pred_region
          _
        $region56: #{tpu_custom_call.1} parent=31 // pred_fallthru
          _
      $region32: #{tpu_custom_call.1} parent=5 // pred_fallthru
        _
      %p414 = scmp.le.s32.totalorder 2, %s18
      // Predicated region
      $region57: #{tpu_custom_call.1} parent=5 // pred_check
        %p415 = pneg %p414
      $region58: #{tpu_custom_call.1} parent=5 // pred_check_branch
        %417 = sbr.rel (%p415) target = $region60
      $region59: #{tpu_custom_call.1} parent=5 // pred_region
        %s418 = ssub.s32 %s18, 2
        // Predicated region
        $region61: #{tpu_custom_call.1} parent=59 // pred_check
          %p419 = pneg %p136
        $region62: #{tpu_custom_call.1} parent=59 // pred_check_branch
          %421 = sbr.rel (%p419) target = $region64
        $region63: #{tpu_custom_call.1} parent=59 // pred_region
          %p422 = scmp.lt.s32.totalorder %s29, 1
          %s423 = scalar_select %p422, %s29, 1
          %s424 = scalar_lea.vmem %s3, %s423
        $region64: #{tpu_custom_call.1} parent=59 // pred_fallthru
          _
        // Predicated region
        $region65: #{tpu_custom_call.1} parent=59 // pred_check
          %p425 = pneg %p162
        $region66: #{tpu_custom_call.1} parent=59 // pred_check_branch
          %427 = sbr.rel (%p425) target = $region68
        $region67: #{tpu_custom_call.1} parent=59 // pred_region
          %p428 = scmp.lt.s32.totalorder %s29, 1
          %s429 = scalar_select %p428, %s29, 1
          %s430 = scalar_lea.vmem %s4, %s429
        $region68: #{tpu_custom_call.1} parent=59 // pred_fallthru
          _
      $region60: #{tpu_custom_call.1} parent=5 // pred_fallthru
        _
    $region6: #{tpu_custom_call.1} parent=1 // loop_footer
      %s22 = sadd.s32 1, %s18
    $region7: #{tpu_custom_call.1} parent=1 // loop_footer_branch
      %17 = sbr.rel target = $region3
    $region8: #{tpu_custom_call.1} parent=1 // loop_exit
      _
    %431 = vsyncpa [#allocation3], 1
    %s432 = scalar_lea.sflag [#allocation3], 1
    %433 = vsyncpa %s432, 1
    %434 = vsyncpa [#allocation7], 1
    %s435 = scalar_lea.sflag [#allocation7], 1
    %436 = vsyncpa %s435, 1
    %437 = vsyncpa [#allocation4], 1
    %s438 = scalar_lea.sflag [#allocation4], 1
    %439 = vsyncpa %s438, 1

</llo_original>
